<compile_context>
chip_gen: v7x
topology: tpu7x:2x2x1
jax: 0.10.0
libtpu: 0.0.40
codegen_flags: <defaults>
</compile_context>

<pallas_src>
import numpy as np
import jax
import jax.numpy as jnp
from jax.experimental import pallas as pl
from jax.experimental.pallas import tpu as pltpu

# ----- model hyper-parameters (small, consistent with the module) -----
B = 2            # batch
TR_LEN = 16      # sequence length of the CM trace / alignment
S_LEN = 16       # TODO(synk): s_len's exact role is not visible in the provided source; config only
P_LEN = 8        # one-hot vocab width (RNA alphabet / CM symbols)
Z_DIM = 8
HIDDEN_ENC = 32
HIDDEN_DEC = 32
CONV = {'ker1': 5, 'ch1': 5, 'ker2': 5, 'ch2': 5, 'ker3': 7, 'ch3': 8}

L1 = TR_LEN - CONV['ker1'] + 1      # 12
L2 = L1 - CONV['ker2'] + 1          # 8
L3 = L2 - CONV['ker3'] + 1          # 2
FLAT = L3 * CONV['ch3']             # 16

X_W = TR_LEN * P_LEN                # 128 : lane-dense input width
C1_W = 64                           # L1*ch1 = 60, padded to 64 lanes
C2_W = L2 * CONV['ch2']             # 40
C3_W = FLAT                         # 16
OUT_W = TR_LEN * P_LEN              # 128 : lane-dense logits width


# ----- packed-parameter layout: one bf16 slab, 128 lanes wide -----
def _round16(n):
    return (n + 15) // 16 * 16      # 16-sublane alignment for bf16 segments


# weight name -> (rows = in features, cols = out features); convs are packed
# as block-Toeplitz dense matrices acting on lane-dense activations.
_W_SHAPES = {
    'w1':  (X_W,  C1_W),
    'w2':  (C1_W, C2_W),
    'w3':  (C2_W, C3_W),
    'wfc': (C3_W, HIDDEN_ENC),
    'wml': (HIDDEN_ENC, 2 * Z_DIM),      # fused mu || logvar head
    'wd1': (Z_DIM, HIDDEN_DEC),
    'wd2': (HIDDEN_DEC, OUT_W),
}
_W_OFFSETS = {}
_off = 0
for _n, (_r, _c) in _W_SHAPES.items():
    _W_OFFSETS[_n] = _off
    _off += _round16(_r)
B_BASE = _off                            # bias rows start here (16-aligned)
_B_ROWS = {'w1': 0, 'w2': 1, 'w3': 2, 'wfc': 3, 'wml': 4, 'wd1': 5, 'wd2': 6}
P_ROWS = B_BASE + 8                      # 344
P_COLS = 128

_FLOPS_PER_ROW = 2 * sum(r * c for r, c in _W_SHAPES.values())


# ----- kernel -----
def cmvae_kernel(x_ref, eps_ref, p_ref, logits_ref, mulv_ref):
    # One aligned (8, 128) load of all bias rows; sliced in-register below.
    biases = p_ref[B_BASE:B_BASE + 8, :].astype(jnp.float32)

    def dense(h_bf16, name, relu=True):
        r, c = _W_SHAPES[name]
        off = _W_OFFSETS[name]
        w = p_ref[off:off + r, 0:c]                              # bf16, static slice
        b = biases[_B_ROWS[name]:_B_ROWS[name] + 1, 0:c]         # (1, c) f32
        y = jnp.dot(h_bf16, w, preferred_element_type=jnp.float32) + b
        return jnp.maximum(y, 0.0) if relu else y

    x = x_ref[...].astype(jnp.bfloat16)                          # one-hot -> exact in bf16

    # ----- encoder: 3x (conv-as-matmul + ReLU) -> FC+ReLU -> fused mu||logvar -----
    h = dense(x, 'w1').astype(jnp.bfloat16)                      # (tb, 64)
    h = dense(h, 'w2').astype(jnp.bfloat16)                      # (tb, 40)
    h = dense(h, 'w3').astype(jnp.bfloat16)                      # (tb, 16)
    h = dense(h, 'wfc').astype(jnp.bfloat16)                     # (tb, 32)
    mulv = dense(h, 'wml', relu=False)                           # (tb, 16) f32: mu || logvar

    # ----- reparameterized sample: z = mu + eps * exp(0.5 * logvar) -----
    # (eps drawn host-side; replaces torch.distributions.Normal.sample())
    mu = mulv[:, 0:Z_DIM]
    logvar = mulv[:, Z_DIM:2 * Z_DIM]
    sigma = jnp.exp(0.5 * logvar)
    z = mu + eps_ref[...] * sigma

    # ----- decoder: MLP -> per-position logits, written lane-dense (tb, 128) -----
    hd = dense(z.astype(jnp.bfloat16), 'wd1').astype(jnp.bfloat16)   # (tb, 32)
    out = dense(hd, 'wd2', relu=False)                               # (tb, 128) f32

    logits_ref[...] = out
    mulv_ref[...] = mulv


# ----- host-side parameter construction / packing -----
def init_params(key):
    ks = jax.random.split(key, 16)
    dn = lambda k, shape, s=0.1: (s * jax.random.normal(k, shape)).astype(jnp.float32)
    return {
        'w1': dn(ks[0], (CONV['ker1'], P_LEN, CONV['ch1'])),          # (K, Cin, Cout)
        'b1': dn(ks[1], (CONV['ch1'],)),
        'w2': dn(ks[2], (CONV['ker2'], CONV['ch1'], CONV['ch2'])),
        'b2': dn(ks[3], (CONV['ch2'],)),
        'w3': dn(ks[4], (CONV['ker3'], CONV['ch2'], CONV['ch3'])),
        'b3': dn(ks[5], (CONV['ch3'],)),
        'wfc': dn(ks[6], (FLAT, HIDDEN_ENC)),
        'bfc': dn(ks[7], (HIDDEN_ENC,)),
        'wmu': dn(ks[8], (HIDDEN_ENC, Z_DIM)),
        'bmu': dn(ks[9], (Z_DIM,)),
        'wlv': dn(ks[10], (HIDDEN_ENC, Z_DIM)),
        'blv': dn(ks[11], (Z_DIM,)),
        'wd1': dn(ks[12], (Z_DIM, HIDDEN_DEC)),
        'bd1': dn(ks[13], (HIDDEN_DEC,)),
        'wd2': dn(ks[14], (HIDDEN_DEC, TR_LEN * P_LEN)),
        'bd2': dn(ks[15], (TR_LEN * P_LEN,)),
    }


def _conv_toeplitz(w, lin, lout, k, cin, cout):
    """Fold a 'valid' Conv1d (stride 1) into a dense matrix acting on a
    lane-dense activation vector (lane = pos*cin + ch -> lane = pos*cout + ch)."""
    big = np.zeros((lin * cin, lout * cout), np.float32)
    w = np.asarray(w, np.float32)                                    # (k, cin, cout)
    for s in range(lout):
        for t in range(k):
            big[(s + t) * cin:(s + t + 1) * cin, s * cout:(s + 1) * cout] = w[t]
    return big


def pack_params(p):
    """Pack all weights & biases into one lane-dense bf16 slab (host side)."""
    slab = np.zeros((P_ROWS, P_COLS), np.float32)

    def put_w(name, mat):
        r, c = _W_SHAPES[name]
        m = np.zeros((r, c), np.float32)
        mat = np.asarray(mat, np.float32)
        m[:mat.shape[0], :mat.shape[1]] = mat
        slab[_W_OFFSETS[name]:_W_OFFSETS[name] + r, 0:c] = m

    def put_b(name, vec):
        c = _W_SHAPES[name][1]
        v = np.zeros((c,), np.float32)
        vv = np.asarray(vec, np.float32).reshape(-1)
        v[:vv.shape[0]] = vv
        slab[B_BASE + _B_ROWS[name], 0:c] = v

    put_w('w1', _conv_toeplitz(p['w1'], TR_LEN, L1, CONV['ker1'], P_LEN, CONV['ch1']))
    put_w('w2', _conv_toeplitz(p['w2'], L1, L2, CONV['ker2'], CONV['ch1'], CONV['ch2']))
    put_w('w3', _conv_toeplitz(p['w3'], L2, L3, CONV['ker3'], CONV['ch2'], CONV['ch3']))
    put_w('wfc', p['wfc'])
    put_w('wml', np.concatenate([np.asarray(p['wmu']), np.asarray(p['wlv'])], axis=1))
    put_w('wd1', p['wd1'])
    put_w('wd2', p['wd2'])

    put_b('w1', np.tile(np.asarray(p['b1']), L1))
    put_b('w2', np.tile(np.asarray(p['b2']), L2))
    put_b('w3', np.tile(np.asarray(p['b3']), L3))
    put_b('wfc', p['bfc'])
    put_b('wml', np.concatenate([np.asarray(p['bmu']), np.asarray(p['blv'])]))
    put_b('wd1', p['bd1'])
    put_b('wd2', p['bd2'])

    return jnp.asarray(slab).astype(jnp.bfloat16)


# ----- tiling -----
def _choose_tiling(bsz):
    """Return (batch_tile, padded_batch). tb is a multiple of 8 and <= 256; the
    grid always has >= 4 steps so the auto-pipeline overlaps DMA with compute
    and v7x can shard batch tiles across both TensorCores."""
    MIN_STEPS = 4
    MAX_TB = 256       # well inside v5e's 16 MiB default scoped VMEM / v7x's 64 MiB
    tb = min(MAX_TB, max(8, ((pl.cdiv(bsz, MIN_STEPS) + 7) // 8) * 8))
    steps = max(MIN_STEPS, pl.cdiv(bsz, tb))
    return tb, steps * tb


# ----- wrapper -----
def cmvae_forward(x, eps, pslab):
    """x: (B, TR_LEN, P_LEN) one-hot, eps: (B, Z_DIM) reparam noise.
    Returns (logits (B, TR_LEN, P_LEN), mu (B, Z_DIM), logvar (B, Z_DIM))."""
    bsz = x.shape[0]
    xf = x.reshape(bsz, X_W).astype(jnp.float32)          # lane-dense input (free flatten)
    eps = eps.astype(jnp.float32)

    tb, padded = _choose_tiling(bsz)
    if padded != bsz:                                     # pad batch instead of odd tiles
        xf = jnp.pad(xf, ((0, padded - bsz), (0, 0)))
        eps = jnp.pad(eps, ((0, padded - bsz), (0, 0)))
    grid = (padded // tb,)

    bytes_accessed = (4 * padded * (X_W + Z_DIM + OUT_W + 2 * Z_DIM)
                      + 2 * P_ROWS * P_COLS)

    logits_flat, mulv = pl.pallas_call(
        cmvae_kernel,
        out_shape=(
            jax.ShapeDtypeStruct((padded, OUT_W), jnp.float32),       # lane-dense logits
            jax.ShapeDtypeStruct((padded, 2 * Z_DIM), jnp.float32),   # fused mu || logvar
        ),
        grid=grid,
        in_specs=[
            pl.BlockSpec((tb, X_W), lambda i: (i, 0)),
            pl.BlockSpec((tb, Z_DIM), lambda i: (i, 0)),
            # constant block index -> fetched once, VMEM-resident across steps
            pl.BlockSpec((P_ROWS, P_COLS), lambda i: (0, 0)),
        ],
        out_specs=(
            pl.BlockSpec((tb, OUT_W), lambda i: (i, 0)),
            pl.BlockSpec((tb, 2 * Z_DIM), lambda i: (i, 0)),
        ),
        compiler_params=pltpu.CompilerParams(
            dimension_semantics=("parallel",),            # v7x: shard tiles over both TCs
            vmem_limit_bytes=32 * 1024 * 1024),
        cost_estimate=pl.CostEstimate(
            flops=padded * _FLOPS_PER_ROW,
            transcendentals=padded * Z_DIM,
            bytes_accessed=bytes_accessed),
    )(xf, eps, pslab)

    logits = logits_flat[:bsz].reshape(bsz, TR_LEN, P_LEN)
    mu = mulv[:bsz, :Z_DIM]
    logvar = mulv[:bsz, Z_DIM:]
    return logits, mu, logvar


if __name__ == "__main__":
    key = jax.random.PRNGKey(0)
    k_x, k_eps, k_p = jax.random.split(key, 3)

    # one-hot RNA/CM input, shape (B, tr_len, p_len), channels-last
    idx = jax.random.randint(k_x, (B, TR_LEN), 0, P_LEN)
    x = jax.nn.one_hot(idx, P_LEN, dtype=jnp.float32)

    # eps for the reparameterization trick (replaces torch.distributions.Normal.sample)
    eps = jax.random.normal(k_eps, (B, Z_DIM), dtype=jnp.float32)

    params = init_params(k_p)
    pslab = pack_params(params)

    logits, mu, logvar = cmvae_forward(x, eps, pslab)
    jax.block_until_ready((logits, mu, logvar))
    assert logits.shape == (B, TR_LEN, P_LEN)
    assert mu.shape == (B, Z_DIM) and logvar.shape == (B, Z_DIM)
    assert bool(jnp.all(jnp.isfinite(logits)))
    print("KERNEL_OK")
</pallas_src>

<mosaic_0001>
module attributes {stable_mosaic.version = 11 : i64} {
  func.func @cmvae_kernel(%arg0: i32, %arg1: memref<8x128xf32, #tpu.memory_space<vmem>>, %arg2: memref<8x8xf32, #tpu.memory_space<vmem>>, %arg3: memref<344x128xbf16, #tpu.memory_space<vmem>>, %arg4: memref<8x128xf32, #tpu.memory_space<vmem>>, %arg5: memref<8x16xf32, #tpu.memory_space<vmem>>) attributes {dimension_semantics = [#tpu.dimension_semantics<parallel>], iteration_bounds = array<i64: 4>, scalar_prefetch = 0 : i64, scratch_operands = 0 : i64, tpu.core_type = #tpu.core_type<tc>, window_params = [{transform_indices = @transform_0, window_bounds = array<i64: 8, 128>}, {transform_indices = @transform_1, window_bounds = array<i64: 8, 8>}, {pipeline_mode = #tpu.pipeline_mode<synchronous>, transform_indices = @transform_2, window_bounds = array<i64: 344, 128>}, {transform_indices = @transform_3, window_bounds = array<i64: 8, 128>}, {transform_indices = @transform_4, window_bounds = array<i64: 8, 16>}]} {
    %c336 = arith.constant 336 : index
    %c0 = arith.constant 0 : index
    %0 = vector.load %arg3[%c336, %c0] : memref<344x128xbf16, #tpu.memory_space<vmem>>, vector<8x128xbf16>
    %1 = arith.extf %0 : vector<8x128xbf16> to vector<8x128xf32>
    %c0_0 = arith.constant 0 : index
    %c0_1 = arith.constant 0 : index
    %2 = vector.load %arg1[%c0_0, %c0_1] : memref<8x128xf32, #tpu.memory_space<vmem>>, vector<8x128xf32>
    %3 = arith.truncf %2 : vector<8x128xf32> to vector<8x128xbf16>
    %c0_2 = arith.constant 0 : index
    %c0_3 = arith.constant 0 : index
    %4 = vector.load %arg3[%c0_2, %c0_3] : memref<344x128xbf16, #tpu.memory_space<vmem>>, vector<128x64xbf16>
    %5 = vector.extract_strided_slice %1 {offsets = [0, 0], sizes = [1, 64], strides = [1, 1]} : vector<8x128xf32> to vector<1x64xf32>
    %cst = arith.constant dense<0.000000e+00> : vector<8x64xf32>
    %6 = tpu.matmul %3, %4, %cst {dimension_numbers = #tpu.dot_dimension_numbers<[1], [0], [0], [1], [0, 0, 1, 1], [], []>} : vector<8x128xbf16>, vector<128x64xbf16>, vector<8x64xf32> -> vector<8x64xf32>
    %7 = vector.broadcast %5 : vector<1x64xf32> to vector<8x64xf32>
    %8 = arith.addf %6, %7 : vector<8x64xf32>
    %cst_4 = arith.constant 0.000000e+00 : f32
    %9 = vector.broadcast %cst_4 : f32 to vector<8x64xf32>
    %10 = arith.maximumf %8, %9 : vector<8x64xf32>
    %11 = arith.truncf %10 : vector<8x64xf32> to vector<8x64xbf16>
    %c128 = arith.constant 128 : index
    %c0_5 = arith.constant 0 : index
    %12 = vector.load %arg3[%c128, %c0_5] : memref<344x128xbf16, #tpu.memory_space<vmem>>, vector<64x40xbf16>
    %13 = vector.extract_strided_slice %1 {offsets = [1, 0], sizes = [1, 40], strides = [1, 1]} : vector<8x128xf32> to vector<1x40xf32>
    %cst_6 = arith.constant dense<0.000000e+00> : vector<8x40xf32>
    %14 = tpu.matmul %11, %12, %cst_6 {dimension_numbers = #tpu.dot_dimension_numbers<[1], [0], [0], [1], [0, 0, 1, 1], [], []>} : vector<8x64xbf16>, vector<64x40xbf16>, vector<8x40xf32> -> vector<8x40xf32>
    %15 = vector.broadcast %13 : vector<1x40xf32> to vector<8x40xf32>
    %16 = arith.addf %14, %15 : vector<8x40xf32>
    %cst_7 = arith.constant 0.000000e+00 : f32
    %17 = vector.broadcast %cst_7 : f32 to vector<8x40xf32>
    %18 = arith.maximumf %16, %17 : vector<8x40xf32>
    %19 = arith.truncf %18 : vector<8x40xf32> to vector<8x40xbf16>
    %c192 = arith.constant 192 : index
    %c0_8 = arith.constant 0 : index
    %20 = vector.load %arg3[%c192, %c0_8] : memref<344x128xbf16, #tpu.memory_space<vmem>>, vector<40x16xbf16>
    %21 = vector.extract_strided_slice %1 {offsets = [2, 0], sizes = [1, 16], strides = [1, 1]} : vector<8x128xf32> to vector<1x16xf32>
    %cst_9 = arith.constant dense<0.000000e+00> : vector<8x16xf32>
    %22 = tpu.matmul %19, %20, %cst_9 {dimension_numbers = #tpu.dot_dimension_numbers<[1], [0], [0], [1], [0, 0, 1, 1], [], []>} : vector<8x40xbf16>, vector<40x16xbf16>, vector<8x16xf32> -> vector<8x16xf32>
    %23 = vector.broadcast %21 : vector<1x16xf32> to vector<8x16xf32>
    %24 = arith.addf %22, %23 : vector<8x16xf32>
    %cst_10 = arith.constant 0.000000e+00 : f32
    %25 = vector.broadcast %cst_10 : f32 to vector<8x16xf32>
    %26 = arith.maximumf %24, %25 : vector<8x16xf32>
    %27 = arith.truncf %26 : vector<8x16xf32> to vector<8x16xbf16>
    %c240 = arith.constant 240 : index
    %c0_11 = arith.constant 0 : index
    %28 = vector.load %arg3[%c240, %c0_11] : memref<344x128xbf16, #tpu.memory_space<vmem>>, vector<16x32xbf16>
    %29 = vector.extract_strided_slice %1 {offsets = [3, 0], sizes = [1, 32], strides = [1, 1]} : vector<8x128xf32> to vector<1x32xf32>
    %cst_12 = arith.constant dense<0.000000e+00> : vector<8x32xf32>
    %30 = tpu.matmul %27, %28, %cst_12 {dimension_numbers = #tpu.dot_dimension_numbers<[1], [0], [0], [1], [0, 0, 1, 1], [], []>} : vector<8x16xbf16>, vector<16x32xbf16>, vector<8x32xf32> -> vector<8x32xf32>
    %31 = vector.broadcast %29 : vector<1x32xf32> to vector<8x32xf32>
    %32 = arith.addf %30, %31 : vector<8x32xf32>
    %cst_13 = arith.constant 0.000000e+00 : f32
    %33 = vector.broadcast %cst_13 : f32 to vector<8x32xf32>
    %34 = arith.maximumf %32, %33 : vector<8x32xf32>
    %35 = arith.truncf %34 : vector<8x32xf32> to vector<8x32xbf16>
    %c256 = arith.constant 256 : index
    %c0_14 = arith.constant 0 : index
    %36 = vector.load %arg3[%c256, %c0_14] : memref<344x128xbf16, #tpu.memory_space<vmem>>, vector<32x16xbf16>
    %37 = vector.extract_strided_slice %1 {offsets = [4, 0], sizes = [1, 16], strides = [1, 1]} : vector<8x128xf32> to vector<1x16xf32>
    %cst_15 = arith.constant dense<0.000000e+00> : vector<8x16xf32>
    %38 = tpu.matmul %35, %36, %cst_15 {dimension_numbers = #tpu.dot_dimension_numbers<[1], [0], [0], [1], [0, 0, 1, 1], [], []>} : vector<8x32xbf16>, vector<32x16xbf16>, vector<8x16xf32> -> vector<8x16xf32>
    %39 = vector.broadcast %37 : vector<1x16xf32> to vector<8x16xf32>
    %40 = arith.addf %38, %39 : vector<8x16xf32>
    %41 = vector.extract_strided_slice %40 {offsets = [0, 0], sizes = [8, 8], strides = [1, 1]} : vector<8x16xf32> to vector<8x8xf32>
    %42 = vector.extract_strided_slice %40 {offsets = [0, 8], sizes = [8, 8], strides = [1, 1]} : vector<8x16xf32> to vector<8x8xf32>
    %cst_16 = arith.constant 5.000000e-01 : f32
    %43 = vector.broadcast %cst_16 : f32 to vector<8x8xf32>
    %44 = arith.mulf %43, %42 : vector<8x8xf32>
    %45 = math.exp %44 : vector<8x8xf32>
    %c0_17 = arith.constant 0 : index
    %c0_18 = arith.constant 0 : index
    %46 = vector.load %arg2[%c0_17, %c0_18] : memref<8x8xf32, #tpu.memory_space<vmem>>, vector<8x8xf32>
    %47 = arith.mulf %46, %45 : vector<8x8xf32>
    %48 = arith.addf %41, %47 : vector<8x8xf32>
    %49 = arith.truncf %48 : vector<8x8xf32> to vector<8x8xbf16>
    %c288 = arith.constant 288 : index
    %c0_19 = arith.constant 0 : index
    %50 = vector.load %arg3[%c288, %c0_19] : memref<344x128xbf16, #tpu.memory_space<vmem>>, vector<8x32xbf16>
    %51 = vector.extract_strided_slice %1 {offsets = [5, 0], sizes = [1, 32], strides = [1, 1]} : vector<8x128xf32> to vector<1x32xf32>
    %cst_20 = arith.constant dense<0.000000e+00> : vector<8x32xf32>
    %52 = tpu.matmul %49, %50, %cst_20 {dimension_numbers = #tpu.dot_dimension_numbers<[1], [0], [0], [1], [0, 0, 1, 1], [], []>} : vector<8x8xbf16>, vector<8x32xbf16>, vector<8x32xf32> -> vector<8x32xf32>
    %53 = vector.broadcast %51 : vector<1x32xf32> to vector<8x32xf32>
    %54 = arith.addf %52, %53 : vector<8x32xf32>
    %cst_21 = arith.constant 0.000000e+00 : f32
    %55 = vector.broadcast %cst_21 : f32 to vector<8x32xf32>
    %56 = arith.maximumf %54, %55 : vector<8x32xf32>
    %57 = arith.truncf %56 : vector<8x32xf32> to vector<8x32xbf16>
    %c304 = arith.constant 304 : index
    %c0_22 = arith.constant 0 : index
    %58 = vector.load %arg3[%c304, %c0_22] : memref<344x128xbf16, #tpu.memory_space<vmem>>, vector<32x128xbf16>
    %59 = vector.extract_strided_slice %1 {offsets = [6, 0], sizes = [1, 128], strides = [1, 1]} : vector<8x128xf32> to vector<1x128xf32>
    %cst_23 = arith.constant dense<0.000000e+00> : vector<8x128xf32>
    %60 = tpu.matmul %57, %58, %cst_23 {dimension_numbers = #tpu.dot_dimension_numbers<[1], [0], [0], [1], [0, 0, 1, 1], [], []>} : vector<8x32xbf16>, vector<32x128xbf16>, vector<8x128xf32> -> vector<8x128xf32>
    %61 = vector.broadcast %59 : vector<1x128xf32> to vector<8x128xf32>
    %62 = arith.addf %60, %61 : vector<8x128xf32>
    %c0_24 = arith.constant 0 : index
    %c0_25 = arith.constant 0 : index
    %63 = vector.load %arg4[%c0_24, %c0_25] : memref<8x128xf32, #tpu.memory_space<vmem>>, vector<8x128xf32>
    tpu.vector_store %arg4[%c0_24, %c0_25], %62 {strides = array<i32>} : memref<8x128xf32, #tpu.memory_space<vmem>>, vector<8x128xf32>,
    %c0_26 = arith.constant 0 : index
    %c0_27 = arith.constant 0 : index
    %64 = vector.load %arg5[%c0_26, %c0_27] : memref<8x16xf32, #tpu.memory_space<vmem>>, vector<8x16xf32>
    tpu.vector_store %arg5[%c0_26, %c0_27], %40 {strides = array<i32>} : memref<8x16xf32, #tpu.memory_space<vmem>>, vector<8x16xf32>,
    return
  }
  func.func @transform_0(%arg0: i32) -> (i32, i32) {
    %c0_i32 = arith.constant 0 : i32
    %c0_i32_0 = arith.constant 0 : i32
    return %arg0, %c0_i32 : i32, i32
  }
  func.func @transform_1(%arg0: i32) -> (i32, i32) {
    %c0_i32 = arith.constant 0 : i32
    %c0_i32_0 = arith.constant 0 : i32
    return %arg0, %c0_i32 : i32, i32
  }
  func.func @transform_2(%arg0: i32) -> (i32, i32) {
    %c0_i32 = arith.constant 0 : i32
    %c0_i32_0 = arith.constant 0 : i32
    %c0_i32_1 = arith.constant 0 : i32
    return %c0_i32, %c0_i32_0 : i32, i32
  }
  func.func @transform_3(%arg0: i32) -> (i32, i32) {
    %c0_i32 = arith.constant 0 : i32
    %c0_i32_0 = arith.constant 0 : i32
    return %arg0, %c0_i32 : i32, i32
  }
  func.func @transform_4(%arg0: i32) -> (i32, i32) {
    %c0_i32 = arith.constant 0 : i32
    %c0_i32_0 = arith.constant 0 : i32
    return %arg0, %c0_i32 : i32, i32
  }
}

</mosaic_0001>

<llo_original>
// kernel: tpu_custom_call.1
$region0: #{tpu_custom_call.1}
  #allocation0 [shape = 'u32[]', space=smem, size = 0x4, offset = 0x4, fixed_abs, tag = 'smem constant byte address 0x4 - core index']
  #allocation1 [shape = 'u32[144,128]{1,0:T(1,128)}', space=vmem, size = 0x12000, scoped, tag = 'internal scratch']
  %s0 = inlined_call_operand.vmem [shape: f32[32,128], index: 0, kind: input, shape index: {}]
  %s1 = inlined_call_operand.vmem [shape: f32[32,8], index: 1, kind: input, shape index: {}]
  %s2 = inlined_call_operand.hbm [shape: bf16[344,128], index: 2, kind: input, shape index: {}]
  %s3 = inlined_call_operand.hbm [shape: f32[32,128], index: 3, kind: output, shape index: {0}]
  %s4 = inlined_call_operand.vmem [shape: f32[32,16], index: 4, kind: output, shape index: {1}]
  %5 = xla_tuple %s3, %s4
  %s6 = sld [smem:[#allocation0]]
  $region57: #{tpu_custom_call.1} parent=0
    _
  %s8 = ssub.s32 1, %s6
  %s9 = scalar_select 0, %s8, %s6
  $region1: #{tpu_custom_call.1} parent=0
    #allocation2 [shape = 'u8[88064]{0}', space=vmem, size = 0x15800, scoped, tag = 'input window, operand 2, single buffered']
    #allocation3 [shape = 's32[2]{0}', space=sflag, size = 0x8, scoped, tag = 'scoped memory for tpu_custom_call.1']
    #allocation4 [shape = 's32[2]{0}', space=sflag, size = 0x8, scoped, tag = 'scoped memory for tpu_custom_call.1']
    #allocation5 [shape = 'u8[8192]{0}', space=vmem, size = 0x2000, scoped, tag = 'output window, operand 0']
    %10 = vsyncpa [#allocation3], 0
    %11 = vsyncpa [#allocation4], 0
    %s12 = scalar_lea.sflag [#allocation4], 1
    %13 = vsyncpa %s12, 0
    loop: start=0, step=1, limit=6
    $region2: #{tpu_custom_call.1} parent=1 // loop_pre_header
      _
    $region3: #{tpu_custom_call.1} parent=1 // loop_header
      %s15 = sphi 0, %s19
      %p16 = scmp.ge.s32.totalorder %s15, 6
      %s25 = sphi 0, %s27
      %s28 = sphi 0, %s25
      %s29 = sphi 0, %s28
      %s45 = sphi 0, %s29
      %s51 = sphi 0, %s53
      %s54 = sphi 0, %s51
      %s55 = sphi 0, %s54
      %s71 = sphi 0, %s55
      %s75 = sphi 0, %s75
      %s77 = sphi 0, %s75
      %s78 = sphi 0, %s77
      %s92 = sphi 0, %s78
      %s98 = sphi 0, %s100
      %s101 = sphi 0, %s98
      %s102 = sphi 0, %s101
      %s118 = sphi 0, %s102
      %s124 = sphi 0, %s126
      %s127 = sphi 0, %s124
      %s128 = sphi 0, %s127
      %s144 = sphi 0, %s128
    $region4: #{tpu_custom_call.1} parent=1 // loop_header_branch
      %18 = sbr.rel (%p16) target = $region8
    $region5: #{tpu_custom_call.1} parent=1 // loop_body
      %s20 = ssub.s32 %s15, 1
      %s21 = ssub.s32 %s15, 2
      %s22 = sadd.s32 %s15, 1
      %s23 = ssub.s32 %s15, %s22
      %p24 = scmp.eq.s32.totalorder %s23, 0
      %s26 = sadd.s32 %s25, 1
      %s27 = scalar_select %p24, %s25, %s26
      %p30 = pneg %p24
      %p31 = scmp.eq.s32.totalorder %s15, 3
      %p32 = por %p30, %p31
      %p33 = scmp.ne.s32.totalorder %s25, %s28
      %p34 = scmp.eq.s32.totalorder %s15, 0
      %p35 = por %p33, %p34
      %p36 = scmp.ne.s32.totalorder %s25, %s28
      %p37 = scmp.eq.s32.totalorder %s20, 3
      %p38 = por %p36, %p37
      %p39 = scmp.ne.s32.totalorder %s28, %s29
      %p40 = scmp.eq.s32.totalorder %s20, 0
      %p41 = por %p39, %p40
      %p42 = scmp.ne.s32.totalorder %s28, %s29
      %p43 = scmp.eq.s32.totalorder %s21, 3
      %p44 = por %p42, %p43
      %p46 = scmp.ne.s32.totalorder %s29, %s45
      %p47 = scmp.eq.s32.totalorder %s21, 0
      %p48 = por %p46, %p47
      %s49 = ssub.s32 %s15, %s22
      %p50 = scmp.eq.s32.totalorder %s49, 0
      %s52 = sadd.s32 %s51, 1
      %s53 = scalar_select %p50, %s51, %s52
      %p56 = pneg %p50
      %p57 = scmp.eq.s32.totalorder %s15, 3
      %p58 = por %p56, %p57
      %p59 = scmp.ne.s32.totalorder %s51, %s54
      %p60 = scmp.eq.s32.totalorder %s15, 0
      %p61 = por %p59, %p60
      %p62 = scmp.ne.s32.totalorder %s51, %s54
      %p63 = scmp.eq.s32.totalorder %s20, 3
      %p64 = por %p62, %p63
      %p65 = scmp.ne.s32.totalorder %s54, %s55
      %p66 = scmp.eq.s32.totalorder %s20, 0
      %p67 = por %p65, %p66
      %p68 = scmp.ne.s32.totalorder %s54, %s55
      %p69 = scmp.eq.s32.totalorder %s21, 3
      %p70 = por %p68, %p69
      %p72 = scmp.ne.s32.totalorder %s55, %s71
      %p73 = scmp.eq.s32.totalorder %s21, 0
      %p74 = por %p72, %p73
      %s76 = sadd.s32 %s75, 1
      %p79 = scmp.eq.s32.totalorder %s15, 3
      %p80 = scmp.ne.s32.totalorder %s75, %s77
      %p81 = scmp.eq.s32.totalorder %s15, 0
      %p82 = por %p80, %p81
      %p83 = scmp.ne.s32.totalorder %s75, %s77
      %p84 = scmp.eq.s32.totalorder %s20, 3
      %p85 = por %p83, %p84
      %p86 = scmp.ne.s32.totalorder %s77, %s78
      %p87 = scmp.eq.s32.totalorder %s20, 0
      %p88 = por %p86, %p87
      %p89 = scmp.ne.s32.totalorder %s77, %s78
      %p90 = scmp.eq.s32.totalorder %s21, 3
      %p91 = por %p89, %p90
      %p93 = scmp.ne.s32.totalorder %s78, %s92
      %p94 = scmp.eq.s32.totalorder %s21, 0
      %p95 = por %p93, %p94
      %s96 = ssub.s32 %s15, %s22
      %p97 = scmp.eq.s32.totalorder %s96, 0
      %s99 = sadd.s32 %s98, 1
      %s100 = scalar_select %p97, %s98, %s99
      %p103 = pneg %p97
      %p104 = scmp.eq.s32.totalorder %s15, 3
      %p105 = por %p103, %p104
      %p106 = scmp.ne.s32.totalorder %s98, %s101
      %p107 = scmp.eq.s32.totalorder %s15, 0
      %p108 = por %p106, %p107
      %p109 = scmp.ne.s32.totalorder %s98, %s101
      %p110 = scmp.eq.s32.totalorder %s20, 3
      %p111 = por %p109, %p110
      %p112 = scmp.ne.s32.totalorder %s101, %s102
      %p113 = scmp.eq.s32.totalorder %s20, 0
      %p114 = por %p112, %p113
      %p115 = scmp.ne.s32.totalorder %s101, %s102
      %p116 = scmp.eq.s32.totalorder %s21, 3
      %p117 = por %p115, %p116
      %p119 = scmp.ne.s32.totalorder %s102, %s118
      %p120 = scmp.eq.s32.totalorder %s21, 0
      %p121 = por %p119, %p120
      %s122 = ssub.s32 %s15, %s22
      %p123 = scmp.eq.s32.totalorder %s122, 0
      %s125 = sadd.s32 %s124, 1
      %s126 = scalar_select %p123, %s124, %s125
      %p129 = pneg %p123
      %p130 = scmp.eq.s32.totalorder %s15, 3
      %p131 = por %p129, %p130
      %p132 = scmp.ne.s32.totalorder %s124, %s127
      %p133 = scmp.eq.s32.totalorder %s15, 0
      %p134 = por %p132, %p133
      %p135 = scmp.ne.s32.totalorder %s124, %s127
      %p136 = scmp.eq.s32.totalorder %s20, 3
      %p137 = por %p135, %p136
      %p138 = scmp.ne.s32.totalorder %s127, %s128
      %p139 = scmp.eq.s32.totalorder %s20, 0
      %p140 = por %p138, %p139
      %p141 = scmp.ne.s32.totalorder %s127, %s128
      %p142 = scmp.eq.s32.totalorder %s21, 3
      %p143 = por %p141, %p142
      %p145 = scmp.ne.s32.totalorder %s128, %s144
      %p146 = scmp.eq.s32.totalorder %s21, 0
      %p147 = por %p145, %p146
      %p148 = scmp.le.s32.totalorder 1, %s15
      %p149 = scmp.lt.s32.totalorder %s15, 5
      %p150 = pnand %p148, %p149
      %p151 = pneg %p150
      // Predicated region
      $region9: #{tpu_custom_call.1} parent=5 // pred_check
        _
      $region10: #{tpu_custom_call.1} parent=5 // pred_check_branch
        %153 = sbr.rel (%p150) target = $region12
      $region11: #{tpu_custom_call.1} parent=5 // pred_region
        %s154 = ssub.s32 %s15, 1
        // Predicated region
        $region13: #{tpu_custom_call.1} parent=11 // pred_check
          %p155 = pneg %p88
        $region14: #{tpu_custom_call.1} parent=11 // pred_check_branch
          %157 = sbr.rel (%p155) target = $region16
        $region15: #{tpu_custom_call.1} parent=11 // pred_region
          %s159 = ssub.s32 2752, 2752
          %160 = vsyncadd [#allocation3], %s159
          %s161 = sshll.u32 [#allocation2], 4
          %s162 = int_to_ptr.vmem [resolvable:$true] %s161
          %167 = dma.hbm_to_vmem [thread:$0]  %s2, 2752, %s162, [#allocation3], 64, 64, 4
        $region16: #{tpu_custom_call.1} parent=11 // pred_fallthru
          _
      $region12: #{tpu_custom_call.1} parent=5 // pred_fallthru
        _
      %p168 = scmp.lt.s32.totalorder %s15, 4
      // Predicated region
      $region17: #{tpu_custom_call.1} parent=5 // pred_check
        %p169 = pneg %p168
      $region18: #{tpu_custom_call.1} parent=5 // pred_check_branch
        %171 = sbr.rel (%p169) target = $region20
      $region19: #{tpu_custom_call.1} parent=5 // pred_region
        // Predicated region
        $region21: #{tpu_custom_call.1} parent=19 // pred_check
          %p172 = pneg %p35
        $region22: #{tpu_custom_call.1} parent=19 // pred_check_branch
          %174 = sbr.rel (%p172) target = $region24
        $region23: #{tpu_custom_call.1} parent=19 // pred_region
          %p175 = scmp.lt.s32.totalorder %s15, 3
          %s176 = scalar_select %p175, %s15, 3
          %s177 = smul.addr %s176, 8
          %s178 = scalar_lea.vmem %s0, %s177
        $region24: #{tpu_custom_call.1} parent=19 // pred_fallthru
          _
        // Predicated region
        $region25: #{tpu_custom_call.1} parent=19 // pred_check
          %p179 = pneg %p61
        $region26: #{tpu_custom_call.1} parent=19 // pred_check_branch
          %181 = sbr.rel (%p179) target = $region28
        $region27: #{tpu_custom_call.1} parent=19 // pred_region
          %p182 = scmp.lt.s32.totalorder %s15, 3
          %s183 = scalar_select %p182, %s15, 3
          %s184 = smul.addr %s183, 8
          %s185 = scalar_lea.vmem %s1, %s184
        $region28: #{tpu_custom_call.1} parent=19 // pred_fallthru
          _
      $region20: #{tpu_custom_call.1} parent=5 // pred_fallthru
        _
      %p186 = scmp.le.s32.totalorder 1, %s15
      %p187 = scmp.lt.s32.totalorder %s15, 5
      %p188 = pnand %p186, %p187
      %p189 = pneg %p188
      // Predicated region
      $region29: #{tpu_custom_call.1} parent=5 // pred_check
        _
      $region30: #{tpu_custom_call.1} parent=5 // pred_check_branch
        %191 = sbr.rel (%p188) target = $region32
      $region31: #{tpu_custom_call.1} parent=5 // pred_region
        %s192 = ssub.s32 %s15, 1
        // Predicated region
        $region33: #{tpu_custom_call.1} parent=31 // pred_check
          %p193 = pneg %p88
        $region34: #{tpu_custom_call.1} parent=31 // pred_check_branch
          %195 = sbr.rel (%p193) target = $region36
        $region35: #{tpu_custom_call.1} parent=31 // pred_region
          %196 = dma.done [#allocation3], 2752
        $region36: #{tpu_custom_call.1} parent=31 // pred_fallthru
          _
        %p197 = scmp.lt.s32.totalorder %s20, 3
        %s198 = scalar_select %p197, %s20, 3
        %s199 = smul.addr %s198, 8
        %s200 = scalar_lea.vmem %s0, %s199
        %p201 = pneg %p41
        %p202 = pneg %p38
        %p203 = scmp.lt.s32.totalorder %s20, 3
        %s204 = scalar_select %p203, %s20, 3
        %s205 = smul.addr %s204, 8
        %s206 = scalar_lea.vmem %s1, %s205
        %p207 = pneg %p67
        %p208 = pneg %p64
        %p209 = pneg %p88
        %p210 = pneg %p85
        %p211 = pneg %p114
        %p212 = pneg %p111
        %s213 = sand.u32 %s101, 1
        %s214 = scalar_lea.sflag [#allocation4], %s213
        %s215 = sand.u32 %s101, 1
        %s216 = smul.addr %s215, 8
        %s217 = scalar_lea.vmem [#allocation5], %s216
        %p218 = pneg %p140
        %p219 = pneg %p137
        %p220 = scmp.lt.s32.totalorder %s20, 3
        %s221 = scalar_select %p220, %s20, 3
        %s222 = smul.addr %s221, 8
        %s223 = scalar_lea.vmem %s4, %s222
        %p224 = scmp.lt.s32.totalorder %s20, 3
        %s225 = scalar_select %p224, %s20, 3
        %s226 = smul.addr %s225, 8
        %s227 = scalar_lea.vmem %s0, %s226
        %p228 = scmp.lt.s32.totalorder %s20, 3
        %s229 = scalar_select %p228, %s20, 3
        %s230 = smul.addr %s229, 8
        %s231 = scalar_lea.vmem %s1, %s230
        %p232 = scmp.lt.s32.totalorder %s20, 3
        %s233 = scalar_select %p232, %s20, 3
        %s234 = smul.addr %s233, 8
        %s235 = scalar_lea.vmem %s4, %s234
        %v237 = vld [vmem:[#allocation2 + $0xa8] sm:$0xf]
        %v238 = vunpack.c.l.bf16 %v237
        %v239 = vld [vmem:[%s227] sm:$0xff]
        %v240 = vpack.c.bf16 %v239, %v239
        %v241 = vld [vmem:[#allocation2] sm:$0xf]
        %v242 = vld [vmem:[#allocation2 + $0x4] sm:$0xf]
        %v243 = vld [vmem:[#allocation2 + $0x8] sm:$0xf]
        %v244 = vld [vmem:[#allocation2 + $0xc] sm:$0xf]
        %v245 = vld [vmem:[#allocation2 + $0x10] sm:$0xf]
        %v246 = vld [vmem:[#allocation2 + $0x14] sm:$0xf]
        %v247 = vld [vmem:[#allocation2 + $0x18] sm:$0xf]
        %v248 = vld [vmem:[#allocation2 + $0x1c] sm:$0xf]
        %v249 = vld [vmem:[#allocation2 + $0x20] sm:$0xf]
        %v250 = vld [vmem:[#allocation2 + $0x24] sm:$0xf]
        %v251 = vld [vmem:[#allocation2 + $0x28] sm:$0xf]
        %v252 = vld [vmem:[#allocation2 + $0x2c] sm:$0xf]
        %v253 = vld [vmem:[#allocation2 + $0x30] sm:$0xf]
        %v254 = vld [vmem:[#allocation2 + $0x34] sm:$0xf]
        %v255 = vld [vmem:[#allocation2 + $0x38] sm:$0xf]
        %v256 = vld [vmem:[#allocation2 + $0x3c] sm:$0xf]
        %v257 = vlaneseq
        %v258 = vshrl.u32 %v257, 7
        %v259 = vsub.s32 0, %v258
        %v260 = vrot.slane %v238, %v259
        %v277 = vunpack.c.l.b16 %v241
        %v278 = vunpack.c.l.b16 %v242
        %v279 = vunpack.c.l.b16 %v243
        %v280 = vunpack.c.l.b16 %v244
        %v281 = vunpack.c.l.b16 %v245
        %v282 = vunpack.c.l.b16 %v246
        %v283 = vunpack.c.l.b16 %v247
        %v284 = vunpack.c.l.b16 %v248
        %v285 = vunpack.c.l.b16 %v249
        %v286 = vunpack.c.l.b16 %v250
        %v287 = vunpack.c.l.b16 %v251
        %v288 = vunpack.c.l.b16 %v252
        %v289 = vunpack.c.l.b16 %v253
        %v290 = vunpack.c.l.b16 %v254
        %v291 = vunpack.c.l.b16 %v255
        %v292 = vunpack.c.l.b16 %v256
        %v293 = vpack.c.b16 %v278, %v277
        %v294 = vpack.c.b16 %v280, %v279
        %v295 = vpack.c.b16 %v282, %v281
        %v296 = vpack.c.b16 %v284, %v283
        %v297 = vpack.c.b16 %v286, %v285
        %v298 = vpack.c.b16 %v288, %v287
        %v299 = vpack.c.b16 %v290, %v289
        %v300 = vpack.c.b16 %v292, %v291
        %309 = vmatprep.subr.bf16.mxu0 0
        %310 = vmatpush1.bf16.msra.mxu0 %v293
        %311 = vmatprep.subr.bf16.mxu0 0
        %312 = vmatpush1.bf16.msra.mxu0 %v294
        %313 = vmatprep.subr.bf16.mxu0 0
        %314 = vmatpush1.bf16.msra.mxu0 %v295
        %315 = vmatprep.subr.bf16.mxu0 0
        %316 = vmatpush1.bf16.msra.mxu0 %v296
        %317 = vmatprep.subr.bf16.mxu0 0
        %318 = vmatpush1.bf16.msra.mxu0 %v297
        %319 = vmatprep.subr.bf16.mxu0 0
        %320 = vmatpush1.bf16.msra.mxu0 %v298
        %321 = vmatprep.subr.bf16.mxu0 0
        %322 = vmatpush1.bf16.msra.mxu0 %v299
        %323 = vmatprep.subr.bf16.mxu0 0
        %324 = vmatpush1.bf16.msra.mxu0 %v300
        %325 = vmatprep.subr.bf16.mxu0 0
        %326 = vmatpush1.bf16.msra.mxu0 0
        %327 = vmatprep.subr.bf16.mxu0 0
        %328 = vmatpush1.bf16.msra.mxu0 0
        %329 = vmatprep.subr.bf16.mxu0 0
        %330 = vmatpush1.bf16.msra.mxu0 0
        %331 = vmatprep.subr.bf16.mxu0 0
        %332 = vmatpush1.bf16.msra.mxu0 0
        %333 = vmatprep.subr.bf16.mxu0 0
        %334 = vmatpush1.bf16.msra.mxu0 0
        %335 = vmatprep.subr.bf16.mxu0 0
        %336 = vmatpush1.bf16.msra.mxu0 0
        %337 = vmatprep.subr.bf16.mxu0 0
        %338 = vmatpush1.bf16.msra.mxu0 0
        %339 = vmatprep.subr.bf16.mxu0 0
        %340 = vmatpush1.bf16.msra.mxu0 0
        %341 = vmatprep.mubr.bf16.mxu0 0
        %342 = vmatmul.mubr.bf16.gmra.mrb[0].mxu0 %v240
        %v343 = vpop.f32.mrb[0].mxu0
        %v344 = vadd.f32 %v260, %v343
        %v345 = vpop.f32.mrb[0].mxu0
        %v346 = vpop.f32.mrb[0].mxu0
        %v347 = vpop.f32.mrb[0].mxu0
        %348 = vdwg.mxu0
        %v349 = vmax.f32 %v344, 0.0
        %v350 = vpack.c.bf16 %v349, %v349
        %v351 = vld [vmem:[#allocation2 + $0x40] sm:$0xf]
        %v352 = vld [vmem:[#allocation2 + $0x44] sm:$0xf]
        %v353 = vld [vmem:[#allocation2 + $0x48] sm:$0xf]
        %v354 = vld [vmem:[#allocation2 + $0x4c] sm:$0xf]
        %v355 = vld [vmem:[#allocation2 + $0x50] sm:$0xf]
        %v356 = vld [vmem:[#allocation2 + $0x54] sm:$0xf]
        %v357 = vld [vmem:[#allocation2 + $0x58] sm:$0xf]
        %v358 = vld [vmem:[#allocation2 + $0x5c] sm:$0xf]
        %v359 = vlaneseq
        %v360 = vshrl.u32 %v359, 7
        %v361 = vsub.s32 1, %v360
        %v362 = vrot.slane %v238, %v361
        %v371 = vunpack.c.l.b16 %v351
        %v372 = vunpack.c.l.b16 %v352
        %v373 = vunpack.c.l.b16 %v353
        %v374 = vunpack.c.l.b16 %v354
        %v375 = vunpack.c.l.b16 %v355
        %v376 = vunpack.c.l.b16 %v356
        %v377 = vunpack.c.l.b16 %v357
        %v378 = vunpack.c.l.b16 %v358
        %v379 = vpack.c.b16 %v372, %v371
        %v380 = vpack.c.b16 %v374, %v373
        %v381 = vpack.c.b16 %v376, %v375
        %v382 = vpack.c.b16 %v378, %v377
        %vm387 = vcmask 523264
        %v389 = vsel %vm387, %v350, 0
        %391 = vmatprep.subr.bf16.mxu0 0
        %392 = vmatpush1.bf16.msra.mxu0 %v379
        %393 = vmatprep.subr.bf16.mxu0 0
        %394 = vmatpush1.bf16.msra.mxu0 %v380
        %395 = vmatprep.subr.bf16.mxu0 0
        %396 = vmatpush1.bf16.msra.mxu0 %v381
        %397 = vmatprep.subr.bf16.mxu0 0
        %398 = vmatpush1.bf16.msra.mxu0 %v382
        %399 = vmatprep.subr.bf16.mxu0 0
        %400 = vmatpush1.bf16.msra.mxu0 0
        %401 = vmatprep.subr.bf16.mxu0 0
        %402 = vmatpush1.bf16.msra.mxu0 0
        %403 = vmatprep.subr.bf16.mxu0 0
        %404 = vmatpush1.bf16.msra.mxu0 0
        %405 = vmatprep.subr.bf16.mxu0 0
        %406 = vmatpush1.bf16.msra.mxu0 0
        %407 = vmatprep.subr.bf16.mxu0 0
        %408 = vmatpush1.bf16.msra.mxu0 0
        %409 = vmatprep.subr.bf16.mxu0 0
        %410 = vmatpush1.bf16.msra.mxu0 0
        %411 = vmatprep.subr.bf16.mxu0 0
        %412 = vmatpush1.bf16.msra.mxu0 0
        %413 = vmatprep.subr.bf16.mxu0 0
        %414 = vmatpush1.bf16.msra.mxu0 0
        %415 = vmatprep.subr.bf16.mxu0 0
        %416 = vmatpush1.bf16.msra.mxu0 0
        %417 = vmatprep.subr.bf16.mxu0 0
        %418 = vmatpush1.bf16.msra.mxu0 0
        %419 = vmatprep.subr.bf16.mxu0 0
        %420 = vmatpush1.bf16.msra.mxu0 0
        %421 = vmatprep.subr.bf16.mxu0 0
        %422 = vmatpush1.bf16.msra.mxu0 0
        %423 = vmatprep.mubr.bf16.mxu0 0
        %424 = vmatmul.mubr.bf16.gmra.mrb[0].mxu0 %v389
        %v425 = vpop.f32.mrb[0].mxu0
        %v426 = vadd.f32 %v362, %v425
        %v427 = vpop.f32.mrb[0].mxu0
        %v428 = vpop.f32.mrb[0].mxu0
        %v429 = vpop.f32.mrb[0].mxu0
        %430 = vdwg.mxu0
        %v431 = vmax.f32 %v426, 0.0
        %v432 = vpack.c.bf16 %v431, %v431
        %v433 = vld [vmem:[#allocation2 + $0x60] sm:$0xf]
        %v434 = vld [vmem:[#allocation2 + $0x64] sm:$0xf]
        %v435 = vld [vmem:[#allocation2 + $0x68] sm:$0xf]
        %v436 = vld [vmem:[#allocation2 + $0x6c] sm:$0xf]
        %v437 = vld [vmem:[#allocation2 + $0x70] sm:$0xf]
        %v438 = vlaneseq
        %v439 = vshrl.u32 %v438, 7
        %v440 = vsub.s32 2, %v439
        %v441 = vrot.slane %v238, %v440
        %v447 = vunpack.c.l.b16 %v433
        %v448 = vunpack.c.l.b16 %v434
        %v449 = vunpack.c.l.b16 %v435
        %v450 = vunpack.c.l.b16 %v436
        %v451 = vunpack.c.l.b16 %v437
        %v452 = vpack.c.b16 %v448, %v447
        %v453 = vpack.c.b16 %v450, %v449
        %v454 = vpack.c.b16 %v451, %v451
        %vm457 = vcmask 326656
        %v459 = vsel %vm457, %v432, 0
        %vm461 = vcmask 1043456
        %v463 = vsel %vm461, %v454, 0
        %465 = vmatprep.subr.bf16.mxu0 0
        %466 = vmatpush1.bf16.msra.mxu0 %v452
        %467 = vmatprep.subr.bf16.mxu0 0
        %468 = vmatpush1.bf16.msra.mxu0 %v453
        %469 = vmatprep.subr.bf16.mxu0 0
        %470 = vmatpush1.bf16.msra.mxu0 %v463
        %471 = vmatprep.subr.bf16.mxu0 0
        %472 = vmatpush1.bf16.msra.mxu0 0
        %473 = vmatprep.subr.bf16.mxu0 0
        %474 = vmatpush1.bf16.msra.mxu0 0
        %475 = vmatprep.subr.bf16.mxu0 0
        %476 = vmatpush1.bf16.msra.mxu0 0
        %477 = vmatprep.subr.bf16.mxu0 0
        %478 = vmatpush1.bf16.msra.mxu0 0
        %479 = vmatprep.subr.bf16.mxu0 0
        %480 = vmatpush1.bf16.msra.mxu0 0
        %481 = vmatprep.subr.bf16.mxu0 0
        %482 = vmatpush1.bf16.msra.mxu0 0
        %483 = vmatprep.subr.bf16.mxu0 0
        %484 = vmatpush1.bf16.msra.mxu0 0
        %485 = vmatprep.subr.bf16.mxu0 0
        %486 = vmatpush1.bf16.msra.mxu0 0
        %487 = vmatprep.subr.bf16.mxu0 0
        %488 = vmatpush1.bf16.msra.mxu0 0
        %489 = vmatprep.subr.bf16.mxu0 0
        %490 = vmatpush1.bf16.msra.mxu0 0
        %491 = vmatprep.subr.bf16.mxu0 0
        %492 = vmatpush1.bf16.msra.mxu0 0
        %493 = vmatprep.subr.bf16.mxu0 0
        %494 = vmatpush1.bf16.msra.mxu0 0
        %495 = vmatprep.subr.bf16.mxu0 0
        %496 = vmatpush1.bf16.msra.mxu0 0
        %497 = vmatprep.mubr.bf16.mxu0 0
        %498 = vmatmul.mubr.bf16.gmra.mrb[0].mxu0 %v459
        %v499 = vpop.f32.mrb[0].mxu0
        %v500 = vadd.f32 %v441, %v499
        %v501 = vpop.f32.mrb[0].mxu0
        %v502 = vpop.f32.mrb[0].mxu0
        %v503 = vpop.f32.mrb[0].mxu0
        %504 = vdwg.mxu0
        %v505 = vmax.f32 %v500, 0.0
        %v506 = vpack.c.bf16 %v505, %v505
        %v507 = vld [vmem:[#allocation2 + $0x78] sm:$0xf]
        %v508 = vld [vmem:[#allocation2 + $0x7c] sm:$0xf]
        %v509 = vlaneseq
        %v510 = vshrl.u32 %v509, 7
        %v511 = vsub.s32 3, %v510
        %v512 = vrot.slane %v238, %v511
        %v515 = vunpack.c.l.b16 %v507
        %v516 = vunpack.c.l.b16 %v508
        %v517 = vpack.c.b16 %v516, %v515
        %vm519 = vcmask 130048
        %v521 = vsel %vm519, %v506, 0
        %523 = vmatprep.subr.bf16.mxu0 0
        %524 = vmatpush1.bf16.msra.mxu0 %v517
        %525 = vmatprep.subr.bf16.mxu0 0
        %526 = vmatpush1.bf16.msra.mxu0 0
        %527 = vmatprep.subr.bf16.mxu0 0
        %528 = vmatpush1.bf16.msra.mxu0 0
        %529 = vmatprep.subr.bf16.mxu0 0
        %530 = vmatpush1.bf16.msra.mxu0 0
        %531 = vmatprep.subr.bf16.mxu0 0
        %532 = vmatpush1.bf16.msra.mxu0 0
        %533 = vmatprep.subr.bf16.mxu0 0
        %534 = vmatpush1.bf16.msra.mxu0 0
        %535 = vmatprep.subr.bf16.mxu0 0
        %536 = vmatpush1.bf16.msra.mxu0 0
        %537 = vmatprep.subr.bf16.mxu0 0
        %538 = vmatpush1.bf16.msra.mxu0 0
        %539 = vmatprep.subr.bf16.mxu0 0
        %540 = vmatpush1.bf16.msra.mxu0 0
        %541 = vmatprep.subr.bf16.mxu0 0
        %542 = vmatpush1.bf16.msra.mxu0 0
        %543 = vmatprep.subr.bf16.mxu0 0
        %544 = vmatpush1.bf16.msra.mxu0 0
        %545 = vmatprep.subr.bf16.mxu0 0
        %546 = vmatpush1.bf16.msra.mxu0 0
        %547 = vmatprep.subr.bf16.mxu0 0
        %548 = vmatpush1.bf16.msra.mxu0 0
        %549 = vmatprep.subr.bf16.mxu0 0
        %550 = vmatpush1.bf16.msra.mxu0 0
        %551 = vmatprep.subr.bf16.mxu0 0
        %552 = vmatpush1.bf16.msra.mxu0 0
        %553 = vmatprep.subr.bf16.mxu0 0
        %554 = vmatpush1.bf16.msra.mxu0 0
        %555 = vmatprep.mubr.bf16.mxu0 0
        %556 = vmatmul.mubr.bf16.gmra.mrb[0].mxu0 %v521
        %v557 = vpop.f32.mrb[0].mxu0
        %v558 = vadd.f32 %v512, %v557
        %v559 = vpop.f32.mrb[0].mxu0
        %v560 = vpop.f32.mrb[0].mxu0
        %v561 = vpop.f32.mrb[0].mxu0
        %562 = vdwg.mxu0
        %v563 = vmax.f32 %v558, 0.0
        %v564 = vpack.c.bf16 %v563, %v563
        %v565 = vld [vmem:[#allocation2 + $0x80] sm:$0xf]
        %v566 = vld [vmem:[#allocation2 + $0x84] sm:$0xf]
        %v567 = vld [vmem:[#allocation2 + $0x88] sm:$0xf]
        %v568 = vld [vmem:[#allocation2 + $0x8c] sm:$0xf]
        %v569 = vlaneseq
        %v570 = vshrl.u32 %v569, 7
        %v571 = vsub.s32 4, %v570
        %v572 = vrot.slane %v238, %v571
        %v577 = vunpack.c.l.b16 %v565
        %v578 = vunpack.c.l.b16 %v566
        %v579 = vunpack.c.l.b16 %v567
        %v580 = vunpack.c.l.b16 %v568
        %v581 = vpack.c.b16 %v578, %v577
        %v582 = vpack.c.b16 %v580, %v579
        %vm585 = vcmask 261120
        %v587 = vsel %vm585, %v564, 0
        %589 = vmatprep.subr.bf16.mxu0 0
        %590 = vmatpush1.bf16.msra.mxu0 %v581
        %591 = vmatprep.subr.bf16.mxu0 0
        %592 = vmatpush1.bf16.msra.mxu0 %v582
        %593 = vmatprep.subr.bf16.mxu0 0
        %594 = vmatpush1.bf16.msra.mxu0 0
        %595 = vmatprep.subr.bf16.mxu0 0
        %596 = vmatpush1.bf16.msra.mxu0 0
        %597 = vmatprep.subr.bf16.mxu0 0
        %598 = vmatpush1.bf16.msra.mxu0 0
        %599 = vmatprep.subr.bf16.mxu0 0
        %600 = vmatpush1.bf16.msra.mxu0 0
        %601 = vmatprep.subr.bf16.mxu0 0
        %602 = vmatpush1.bf16.msra.mxu0 0
        %603 = vmatprep.subr.bf16.mxu0 0
        %604 = vmatpush1.bf16.msra.mxu0 0
        %605 = vmatprep.subr.bf16.mxu0 0
        %606 = vmatpush1.bf16.msra.mxu0 0
        %607 = vmatprep.subr.bf16.mxu0 0
        %608 = vmatpush1.bf16.msra.mxu0 0
        %609 = vmatprep.subr.bf16.mxu0 0
        %610 = vmatpush1.bf16.msra.mxu0 0
        %611 = vmatprep.subr.bf16.mxu0 0
        %612 = vmatpush1.bf16.msra.mxu0 0
        %613 = vmatprep.subr.bf16.mxu0 0
        %614 = vmatpush1.bf16.msra.mxu0 0
        %615 = vmatprep.subr.bf16.mxu0 0
        %616 = vmatpush1.bf16.msra.mxu0 0
        %617 = vmatprep.subr.bf16.mxu0 0
        %618 = vmatpush1.bf16.msra.mxu0 0
        %619 = vmatprep.subr.bf16.mxu0 0
        %620 = vmatpush1.bf16.msra.mxu0 0
        %621 = vmatprep.mubr.bf16.mxu0 0
        %622 = vmatmul.mubr.bf16.gmra.mrb[0].mxu0 %v587
        %v623 = vpop.f32.mrb[0].mxu0
        %v624 = vadd.f32 %v572, %v623
        %v625 = vpop.f32.mrb[0].mxu0
        %v626 = vpop.f32.mrb[0].mxu0
        %v627 = vpop.f32.mrb[0].mxu0
        %628 = vdwg.mxu0
        %v629 = vmul.f32 %v624, 0.5
        %v630 = vmul.f32 %v629, 1.442695
        %v631 = vpow.pop %v630
        %v632 = vld [vmem:[%s231] sm:$0xff]
        %634 = vrot.lane.b32.xlu0 %v631, 120
        %v635 = vpop.permute.xlu0 %634
        %v637 = vmul.f32 %v632, %v635
        %v638 = vadd.f32 %v624, %v637
        %v639 = vpack.c.bf16 %v638, %v638
        %v640 = vld [vmem:[#allocation2 + $0x90] sm:$0xf]
        %v641 = vlaneseq
        %v642 = vshrl.u32 %v641, 7
        %v643 = vsub.s32 5, %v642
        %v644 = vrot.slane %v238, %v643
        %vm645 = vcmask 64512
        %v647 = vsel %vm645, %v639, 0
        %v650 = vsel %vm461, %v640, 0
        %652 = vmatprep.subr.bf16.mxu0 0
        %653 = vmatpush1.bf16.msra.mxu0 %v650
        %654 = vmatprep.subr.bf16.mxu0 0
        %655 = vmatpush1.bf16.msra.mxu0 0
        %656 = vmatprep.subr.bf16.mxu0 0
        %657 = vmatpush1.bf16.msra.mxu0 0
        %658 = vmatprep.subr.bf16.mxu0 0
        %659 = vmatpush1.bf16.msra.mxu0 0
        %660 = vmatprep.subr.bf16.mxu0 0
        %661 = vmatpush1.bf16.msra.mxu0 0
        %662 = vmatprep.subr.bf16.mxu0 0
        %663 = vmatpush1.bf16.msra.mxu0 0
        %664 = vmatprep.subr.bf16.mxu0 0
        %665 = vmatpush1.bf16.msra.mxu0 0
        %666 = vmatprep.subr.bf16.mxu0 0
        %667 = vmatpush1.bf16.msra.mxu0 0
        %668 = vmatprep.subr.bf16.mxu0 0
        %669 = vmatpush1.bf16.msra.mxu0 0
        %670 = vmatprep.subr.bf16.mxu0 0
        %671 = vmatpush1.bf16.msra.mxu0 0
        %672 = vmatprep.subr.bf16.mxu0 0
        %673 = vmatpush1.bf16.msra.mxu0 0
        %674 = vmatprep.subr.bf16.mxu0 0
        %675 = vmatpush1.bf16.msra.mxu0 0
        %676 = vmatprep.subr.bf16.mxu0 0
        %677 = vmatpush1.bf16.msra.mxu0 0
        %678 = vmatprep.subr.bf16.mxu0 0
        %679 = vmatpush1.bf16.msra.mxu0 0
        %680 = vmatprep.subr.bf16.mxu0 0
        %681 = vmatpush1.bf16.msra.mxu0 0
        %682 = vmatprep.subr.bf16.mxu0 0
        %683 = vmatpush1.bf16.msra.mxu0 0
        %684 = vmatprep.mubr.bf16.mxu0 0
        %685 = vmatmul.mubr.bf16.gmra.mrb[0].mxu0 %v647
        %v686 = vpop.f32.mrb[0].mxu0
        %v687 = vadd.f32 %v644, %v686
        %v688 = vpop.f32.mrb[0].mxu0
        %v689 = vpop.f32.mrb[0].mxu0
        %v690 = vpop.f32.mrb[0].mxu0
        %691 = vdwg.mxu0
        %v692 = vmax.f32 %v687, 0.0
        %v693 = vpack.c.bf16 %v692, %v692
        %v694 = vld [vmem:[#allocation2 + $0x98] sm:$0xf]
        %v695 = vld [vmem:[#allocation2 + $0x9c] sm:$0xf]
        %v696 = vld [vmem:[#allocation2 + $0xa0] sm:$0xf]
        %v697 = vld [vmem:[#allocation2 + $0xa4] sm:$0xf]
        %v698 = vlaneseq
        %v699 = vshrl.u32 %v698, 7
        %v700 = vsub.s32 6, %v699
        %v701 = vrot.slane %v238, %v700
        %v706 = vunpack.c.l.b16 %v694
        %v707 = vunpack.c.l.b16 %v695
        %v708 = vunpack.c.l.b16 %v696
        %v709 = vunpack.c.l.b16 %v697
        %v710 = vpack.c.b16 %v707, %v706
        %v711 = vpack.c.b16 %v709, %v708
        %v715 = vsel %vm585, %v693, 0
        %717 = vmatprep.subr.bf16.mxu0 0
        %718 = vmatpush1.bf16.msra.mxu0 %v710
        %719 = vmatprep.subr.bf16.mxu0 0
        %720 = vmatpush1.bf16.msra.mxu0 %v711
        %721 = vmatprep.subr.bf16.mxu0 0
        %722 = vmatpush1.bf16.msra.mxu0 0
        %723 = vmatprep.subr.bf16.mxu0 0
        %724 = vmatpush1.bf16.msra.mxu0 0
        %725 = vmatprep.subr.bf16.mxu0 0
        %726 = vmatpush1.bf16.msra.mxu0 0
        %727 = vmatprep.subr.bf16.mxu0 0
        %728 = vmatpush1.bf16.msra.mxu0 0
        %729 = vmatprep.subr.bf16.mxu0 0
        %730 = vmatpush1.bf16.msra.mxu0 0
        %731 = vmatprep.subr.bf16.mxu0 0
        %732 = vmatpush1.bf16.msra.mxu0 0
        %733 = vmatprep.subr.bf16.mxu0 0
        %734 = vmatpush1.bf16.msra.mxu0 0
        %735 = vmatprep.subr.bf16.mxu0 0
        %736 = vmatpush1.bf16.msra.mxu0 0
        %737 = vmatprep.subr.bf16.mxu0 0
        %738 = vmatpush1.bf16.msra.mxu0 0
        %739 = vmatprep.subr.bf16.mxu0 0
        %740 = vmatpush1.bf16.msra.mxu0 0
        %741 = vmatprep.subr.bf16.mxu0 0
        %742 = vmatpush1.bf16.msra.mxu0 0
        %743 = vmatprep.subr.bf16.mxu0 0
        %744 = vmatpush1.bf16.msra.mxu0 0
        %745 = vmatprep.subr.bf16.mxu0 0
        %746 = vmatpush1.bf16.msra.mxu0 0
        %747 = vmatprep.subr.bf16.mxu0 0
        %748 = vmatpush1.bf16.msra.mxu0 0
        %749 = vmatprep.mubr.bf16.mxu0 0
        %750 = vmatmul.mubr.bf16.gmra.mrb[0].mxu0 %v715
        %v751 = vpop.f32.mrb[0].mxu0
        %v752 = vadd.f32 %v701, %v751
        %v753 = vpop.f32.mrb[0].mxu0
        %v754 = vpop.f32.mrb[0].mxu0
        %v755 = vpop.f32.mrb[0].mxu0
        %756 = vdwg.mxu0
        %757 = vst [vmem:[%s217] sm:$0xff] %v752
        %758 = vst.msk [vmem:[%s235] sm:$0xff] %vm519, %v624
        %s759 = sand.u32 %s101, 1
        %s760 = scalar_lea.sflag [#allocation4], %s759
        %s761 = sand.u32 %s101, 1
        %s762 = smul.addr %s761, 8
        %s763 = scalar_lea.vmem [#allocation5], %s762
        %p764 = scmp.lt.s32.totalorder %s20, 3
        %s765 = scalar_select %p764, %s20, 3
        %s766 = smul.addr %s765, 8
        %s767 = scalar_lea.vmem %s4, %s766
        // Predicated region
        $region37: #{tpu_custom_call.1} parent=31 // pred_check
          %p768 = pneg %p111
        $region38: #{tpu_custom_call.1} parent=31 // pred_check_branch
          %770 = sbr.rel (%p768) target = $region40
        $region39: #{tpu_custom_call.1} parent=31 // pred_region
          %s772 = ssub.s32 128, 128
          %773 = vsyncadd %s760, %s772
          %s774 = smul.addr %s20, 128
          %s775 = scalar_lea.hbm %s3, %s774
          %s777 = sshll.u32 %s763, 4
          %s778 = int_to_ptr.vmem [resolvable:$true] %s777
          %780 = dma.vmem_to_hbm [thread:$0]  %s778, 128, %s775, %s760
        $region40: #{tpu_custom_call.1} parent=31 // pred_fallthru
          _
        // Predicated region
        $region41: #{tpu_custom_call.1} parent=31 // pred_check
          %p781 = pneg %p137
        $region42: #{tpu_custom_call.1} parent=31 // pred_check_branch
          %783 = sbr.rel (%p781) target = $region44
        $region43: #{tpu_custom_call.1} parent=31 // pred_region
          _
        $region44: #{tpu_custom_call.1} parent=31 // pred_fallthru
          _
      $region32: #{tpu_custom_call.1} parent=5 // pred_fallthru
        _
      %p784 = scmp.le.s32.totalorder 2, %s15
      // Predicated region
      $region45: #{tpu_custom_call.1} parent=5 // pred_check
        %p785 = pneg %p784
      $region46: #{tpu_custom_call.1} parent=5 // pred_check_branch
        %787 = sbr.rel (%p785) target = $region48
      $region47: #{tpu_custom_call.1} parent=5 // pred_region
        %s788 = ssub.s32 %s15, 2
        // Predicated region
        $region49: #{tpu_custom_call.1} parent=47 // pred_check
          %p789 = pneg %p117
        $region50: #{tpu_custom_call.1} parent=47 // pred_check_branch
          %791 = sbr.rel (%p789) target = $region52
        $region51: #{tpu_custom_call.1} parent=47 // pred_region
          %s792 = sand.u32 %s102, 1
          %s793 = scalar_lea.sflag [#allocation4], %s792
          %s794 = sand.u32 %s102, 1
          %s795 = smul.addr %s794, 8
          %s796 = scalar_lea.vmem [#allocation5], %s795
          %797 = dma.done %s793, 128
        $region52: #{tpu_custom_call.1} parent=47 // pred_fallthru
          _
        // Predicated region
        $region53: #{tpu_custom_call.1} parent=47 // pred_check
          %p798 = pneg %p143
        $region54: #{tpu_custom_call.1} parent=47 // pred_check_branch
          %800 = sbr.rel (%p798) target = $region56
        $region55: #{tpu_custom_call.1} parent=47 // pred_region
          %p801 = scmp.lt.s32.totalorder %s21, 3
          %s802 = scalar_select %p801, %s21, 3
          %s803 = smul.addr %s802, 8
          %s804 = scalar_lea.vmem %s4, %s803
        $region56: #{tpu_custom_call.1} parent=47 // pred_fallthru
          _
      $region48: #{tpu_custom_call.1} parent=5 // pred_fallthru
        _
    $region6: #{tpu_custom_call.1} parent=1 // loop_footer
      %s19 = sadd.s32 1, %s15
    $region7: #{tpu_custom_call.1} parent=1 // loop_footer_branch
      %14 = sbr.rel target = $region3
    $region8: #{tpu_custom_call.1} parent=1 // loop_exit
      _
    %805 = vsyncpa [#allocation3], 1
    %s806 = scalar_lea.sflag [#allocation3], 1
    %807 = vsyncpa %s806, 1
    %808 = vsyncpa [#allocation4], 1
    %s809 = scalar_lea.sflag [#allocation4], 1
    %810 = vsyncpa %s809, 1

</llo_original>
